<compile_context>
chip_gen: v5e
topology: v5e:2x2
jax: 0.10.0
libtpu: 0.0.40
codegen_flags: <defaults>
</compile_context>

<pallas_src>
import functools

import jax
import jax.numpy as jnp
import numpy as np
from jax.experimental import pallas as pl
from jax.experimental.pallas import tpu as pltpu


def _dgc_kernel(x_ref, o_ref, *, time_steps, threshold):
    # x_ref block: (Bt, C, L) ; o_ref block: (Bt, C, Cp), Cp = round_up(C, 128)
    x = x_ref[...].astype(jnp.float32)                     # (Bt, C, L)
    Bt, C, L = x.shape
    Cp = o_ref.shape[-1]

    # row-wise mean / unbiased std (torch.std default: divide by N-1)
    mean = jnp.mean(x, axis=2, keepdims=True)              # (Bt, C, 1)
    xc = x - mean
    inv_nm1 = (1.0 / (L - 1)) if L > 1 else float("nan")   # L==1 -> NaN (torch semantics)
    var = jnp.sum(xc * xc, axis=2, keepdims=True) * inv_nm1
    std = jnp.sqrt(var) + 1e-8                             # exact eps placement (matches torch)
    x_norm = xc * (1.0 / std)                              # tiny (Bt,C,1) divide, big multiply

    # correlation-style similarity: batched Gram matrix on the MXU, contracting the
    # last axis of both operands (no materialized transpose).
    # (On v6e/v7x one could cast x_norm to bf16 here; kept in f32 because the result
    #  is binarized and borderline correlations near `threshold` could flip.)
    adj = jnp.einsum('bcl,bdl->bcd', x_norm, x_norm,
                     preferred_element_type=jnp.float32)
    adj = adj * (1.0 / float(time_steps))                  # (Bt, C, C)

    # binarize
    adj = (adj > threshold).astype(jnp.float32)

    # add identity (>=2-D iota, TPU-safe)
    row = jax.lax.broadcasted_iota(jnp.int32, (Bt, C, C), 1)
    col = jax.lax.broadcasted_iota(jnp.int32, (Bt, C, C), 2)
    adj = adj + (row == col).astype(jnp.float32)

    # symmetric degree normalization D^{-1/2} A D^{-1/2}. adj is exactly symmetric,
    # so column-degree == row-degree; using a second reduce avoids transposing the
    # (Bt, C, 1) scale vector.
    deg_r = jnp.sum(adj, axis=2, keepdims=True)            # (Bt, C, 1)
    deg_c = jnp.sum(adj, axis=1, keepdims=True)            # (Bt, 1, C)
    adj = adj * jax.lax.rsqrt(deg_r + 1e-8) * jax.lax.rsqrt(deg_c + 1e-8)

    # lane-dense store: pad the last dim up to Cp with zeros (sliced off in wrapper).
    if Cp > C:
        adj = jnp.concatenate(
            [adj, jnp.zeros((Bt, C, Cp - C), jnp.float32)], axis=2)
    o_ref[...] = adj.astype(o_ref.dtype)


def _pick_batch_tile(B, C, L, *, budget_bytes=2 << 20):
    """Largest divisor of B whose (Bt, C, L) f32 block fits `budget_bytes`, while
    keeping at least two grid steps when B >= 2 (feeds both v7x TensorCores).
    The budget keeps double-buffered blocks far under v5e's 16 MiB default scoped
    VMEM and v7x's 64 MiB physical VMEM."""
    per_b = max(1, C * L * 4)
    max_bt = max(1, budget_bytes // per_b)
    if B >= 2:
        max_bt = min(max_bt, B // 2)          # keep >= 2 grid steps
    max_bt = max(1, min(max_bt, B))
    bt = 1
    for d in range(1, max_bt + 1):
        if B % d == 0:
            bt = d
    return bt


def dynamic_graph_constructor(x, *, threshold=0.5):
    """x: [B, C, T, F]  ->  normalized adjacency [B, C, C] (float32)."""
    B, C, T, F = x.shape
    L = T * F
    # The torch module flattens as permute(0,1,3,2).reshape(B, C, -1); mean, std and
    # the Gram inner product are permutation-invariant over L, so a plain (free,
    # layout-preserving) reshape gives the identical adjacency without an HBM
    # transpose pass.
    x_r = x.reshape(B, C, L)

    Bt = _pick_batch_tile(B, C, L)
    Cp = pl.cdiv(C, 128) * 128                # lane-dense output width

    kernel = functools.partial(_dgc_kernel, time_steps=T, threshold=threshold)

    out_padded = pl.pallas_call(
        kernel,
        out_shape=jax.ShapeDtypeStruct((B, C, Cp), jnp.float32),
        grid_spec=pltpu.PrefetchScalarGridSpec(
            num_scalar_prefetch=0,
            grid=(B // Bt,),
            in_specs=[pl.BlockSpec((Bt, C, L), lambda b: (b, 0, 0))],
            out_specs=pl.BlockSpec((Bt, C, Cp), lambda b: (b, 0, 0)),
        ),
        compiler_params=pltpu.CompilerParams(
            dimension_semantics=("parallel",),
            # Bt selection keeps double-buffered blocks well below this on all of
            # v5e / v6e / v7x.
            vmem_limit_bytes=32 * 1024 * 1024,
        ),
    )(x_r)

    return out_padded[:, :, :C] if Cp != C else out_padded


def _reference_jax(x, threshold=0.5):
    """Pure-JAX mirror of the PyTorch forward (including the permute), for checking."""
    B, C, T, F = x.shape
    xr = jnp.transpose(x, (0, 1, 3, 2)).reshape(B, C, -1)
    mean = xr.mean(axis=2, keepdims=True)
    std = jnp.std(xr, axis=2, keepdims=True, ddof=1) + 1e-8
    xn = (xr - mean) / std
    adj = jnp.einsum('bcl,bdl->bcd', xn, xn) / T
    adj = (adj > threshold).astype(jnp.float32)
    adj = adj + jnp.eye(C)[None]
    deg = adj.sum(axis=2, keepdims=True)
    dsi = jnp.power(deg + 1e-8, -0.5)
    return adj * dsi * jnp.swapaxes(dsi, 1, 2)


if __name__ == "__main__":
    # DynamicGraphConstructor has no learned parameters (connectivity_type / threshold
    # are plain config), so no weight init is needed.
    B, C, T, F = 2, 8, 8, 16                  # small shapes consistent with the module
    key = jax.random.PRNGKey(0)
    x = jax.random.normal(key, (B, C, T, F), dtype=jnp.float32)

    adj = dynamic_graph_constructor(x, threshold=0.5)
    adj = jax.block_until_ready(adj)

    ref = _reference_jax(x, threshold=0.5)
    assert adj.shape == (B, C, C)
    np.testing.assert_allclose(np.asarray(adj), np.asarray(ref), rtol=1e-5, atol=1e-5)

    print("KERNEL_OK")
</pallas_src>

<mosaic_0001>
module attributes {stable_mosaic.version = 11 : i64} {
  func.func @_dgc_kernel(%arg0: i32, %arg1: memref<1x8x128xf32, #tpu.memory_space<vmem>>, %arg2: memref<1x8x128xf32, #tpu.memory_space<vmem>>) attributes {dimension_semantics = [#tpu.dimension_semantics<parallel>], iteration_bounds = array<i64: 2>, scalar_prefetch = 0 : i64, scratch_operands = 0 : i64, tpu.core_type = #tpu.core_type<tc>, window_params = [{transform_indices = @transform_0, window_bounds = array<i64: 1, 8, 128>}, {transform_indices = @transform_1, window_bounds = array<i64: 1, 8, 128>}]} {
    %c0 = arith.constant 0 : index
    %c0_0 = arith.constant 0 : index
    %c0_1 = arith.constant 0 : index
    %0 = vector.load %arg1[%c0, %c0_0, %c0_1] : memref<1x8x128xf32, #tpu.memory_space<vmem>>, vector<1x8x128xf32>
    %cst = arith.constant dense<0.000000e+00> : vector<1x8xf32>
    %1 = vector.multi_reduction <add>, %0, %cst [2] : vector<1x8x128xf32> to vector<1x8xf32>
    %2 = vector.shape_cast %1 : vector<1x8xf32> to vector<1x8x1xf32>
    %cst_2 = arith.constant 1.280000e+02 : f32
    %3 = vector.broadcast %cst_2 : f32 to vector<1x8x1xf32>
    %4 = arith.divf %2, %3 : vector<1x8x1xf32>
    %5 = vector.broadcast %4 : vector<1x8x1xf32> to vector<1x8x128xf32>
    %6 = arith.subf %0, %5 : vector<1x8x128xf32>
    %7 = arith.mulf %6, %6 : vector<1x8x128xf32>
    %cst_3 = arith.constant dense<0.000000e+00> : vector<1x8xf32>
    %8 = vector.multi_reduction <add>, %7, %cst_3 [2] : vector<1x8x128xf32> to vector<1x8xf32>
    %9 = vector.shape_cast %8 : vector<1x8xf32> to vector<1x8x1xf32>
    %cst_4 = arith.constant 0.00787401571 : f32
    %10 = vector.broadcast %cst_4 : f32 to vector<1x8x1xf32>
    %11 = arith.mulf %9, %10 : vector<1x8x1xf32>
    %12 = math.sqrt %11 : vector<1x8x1xf32>
    %cst_5 = arith.constant 9.99999993E-9 : f32
    %13 = vector.broadcast %cst_5 : f32 to vector<1x8x1xf32>
    %14 = arith.addf %12, %13 : vector<1x8x1xf32>
    %cst_6 = arith.constant 1.000000e+00 : f32
    %15 = vector.broadcast %cst_6 : f32 to vector<1x8x1xf32>
    %16 = arith.divf %15, %14 : vector<1x8x1xf32>
    %17 = vector.broadcast %16 : vector<1x8x1xf32> to vector<1x8x128xf32>
    %18 = arith.mulf %6, %17 : vector<1x8x128xf32>
    "tpu.trace_start"() <{level = 10 : i32, message = "bcl,bdl->bcd"}> : () -> ()
    %cst_7 = arith.constant dense<0.000000e+00> : vector<1x8x8xf32>
    %19 = tpu.matmul %18, %18, %cst_7 {dimension_numbers = #tpu.dot_dimension_numbers<[2], [2], [1], [1], [0, 0, 0, 1, 1, 1], [0], [0]>} : vector<1x8x128xf32>, vector<1x8x128xf32>, vector<1x8x8xf32> -> vector<1x8x8xf32>
    "tpu.trace_stop"() : () -> ()
    %cst_8 = arith.constant 1.250000e-01 : f32
    %20 = vector.broadcast %cst_8 : f32 to vector<1x8x8xf32>
    %21 = arith.mulf %19, %20 : vector<1x8x8xf32>
    %cst_9 = arith.constant 5.000000e-01 : f32
    %22 = vector.broadcast %cst_9 : f32 to vector<1x8x8xf32>
    %23 = arith.cmpf ogt, %21, %22 : vector<1x8x8xf32>
    %24 = arith.extui %23 : vector<1x8x8xi1> to vector<1x8x8xi32>
    %25 = arith.sitofp %24 : vector<1x8x8xi32> to vector<1x8x8xf32>
    %26 = tpu.iota {dimensions = array<i32: 1>} : vector<1x8x8xi32>
    %27 = tpu.iota {dimensions = array<i32: 2>} : vector<1x8x8xi32>
    %28 = arith.cmpi eq, %26, %27 : vector<1x8x8xi32>
    %29 = arith.extui %28 : vector<1x8x8xi1> to vector<1x8x8xi32>
    %30 = arith.sitofp %29 : vector<1x8x8xi32> to vector<1x8x8xf32>
    %31 = arith.addf %25, %30 : vector<1x8x8xf32>
    %cst_10 = arith.constant dense<0.000000e+00> : vector<1x8xf32>
    %32 = vector.multi_reduction <add>, %31, %cst_10 [2] : vector<1x8x8xf32> to vector<1x8xf32>
    %33 = vector.shape_cast %32 : vector<1x8xf32> to vector<1x8x1xf32>
    %cst_11 = arith.constant dense<0.000000e+00> : vector<1x8xf32>
    %34 = vector.multi_reduction <add>, %31, %cst_11 [1] : vector<1x8x8xf32> to vector<1x8xf32>
    %35 = vector.shape_cast %34 : vector<1x8xf32> to vector<1x1x8xf32>
    %cst_12 = arith.constant 9.99999993E-9 : f32
    %36 = vector.broadcast %cst_12 : f32 to vector<1x8x1xf32>
    %37 = arith.addf %33, %36 : vector<1x8x1xf32>
    %38 = math.rsqrt %37 : vector<1x8x1xf32>
    %39 = vector.broadcast %38 : vector<1x8x1xf32> to vector<1x8x8xf32>
    %40 = arith.mulf %31, %39 : vector<1x8x8xf32>
    %cst_13 = arith.constant 9.99999993E-9 : f32
    %41 = vector.broadcast %cst_13 : f32 to vector<1x1x8xf32>
    %42 = arith.addf %35, %41 : vector<1x1x8xf32>
    %43 = math.rsqrt %42 : vector<1x1x8xf32>
    %44 = vector.broadcast %43 : vector<1x1x8xf32> to vector<1x8x8xf32>
    %45 = arith.mulf %40, %44 : vector<1x8x8xf32>
    %cst_14 = arith.constant 0.000000e+00 : f32
    %46 = vector.broadcast %cst_14 : f32 to vector<1x8x120xf32>
    %47 = tpu.concatenate %45, %46 in 2 : vector<1x8x8xf32>, vector<1x8x120xf32> -> vector<1x8x128xf32>
    %c0_15 = arith.constant 0 : index
    %c0_16 = arith.constant 0 : index
    %c0_17 = arith.constant 0 : index
    %48 = vector.load %arg2[%c0_15, %c0_16, %c0_17] : memref<1x8x128xf32, #tpu.memory_space<vmem>>, vector<1x8x128xf32>
    tpu.vector_store %arg2[%c0_15, %c0_16, %c0_17], %47 {strides = array<i32>} : memref<1x8x128xf32, #tpu.memory_space<vmem>>, vector<1x8x128xf32>,
    return
  }
  func.func @transform_0(%arg0: i32) -> (i32, i32, i32) {
    %c0_i32 = arith.constant 0 : i32
    %c0_i32_0 = arith.constant 0 : i32
    %c0_i32_1 = arith.constant 0 : i32
    return %arg0, %c0_i32, %c0_i32_0 : i32, i32, i32
  }
  func.func @transform_1(%arg0: i32) -> (i32, i32, i32) {
    %c0_i32 = arith.constant 0 : i32
    %c0_i32_0 = arith.constant 0 : i32
    %c0_i32_1 = arith.constant 0 : i32
    return %arg0, %c0_i32, %c0_i32_0 : i32, i32, i32
  }
}

</mosaic_0001>

<llo_original>
// kernel: tpu_custom_call.1
$region0: #{tpu_custom_call.1}
  #allocation0 [shape = 'u32[]', space=smem, size = 0x4, offset = 0x4, fixed_abs, tag = 'smem constant byte address 0x4 - core index']
  #allocation1 [shape = 'u32[72,128]{1,0:T(1,128)}', space=vmem, size = 0x9000, scoped, tag = 'internal scratch']
  %s0 = inlined_call_operand.hbm [shape: f32[2,8,128], index: 0, kind: input, shape index: {}]
  %s1 = inlined_call_operand.hbm [shape: f32[2,8,128], index: 1, kind: output, shape index: {}]
  %s2 = sld [smem:[#allocation0]]
  $region41: #{tpu_custom_call.1} parent=0
    _
  %s4 = ssub.s32 1, %s2
  %s5 = scalar_select 0, %s4, %s2
  $region1: #{tpu_custom_call.1} parent=0
    #allocation2 [shape = 'u8[8192]{0}', space=vmem, size = 0x2000, scoped, tag = 'input window, operand 0']
    #allocation3 [shape = 's32[2]{0}', space=sflag, size = 0x8, scoped, tag = 'scoped memory for tpu_custom_call.1']
    #allocation4 [shape = 's32[2]{0}', space=sflag, size = 0x8, scoped, tag = 'scoped memory for tpu_custom_call.1']
    #allocation5 [shape = 'u8[8192]{0}', space=vmem, size = 0x2000, scoped, tag = 'output window, operand 0']
    %6 = vsyncpa [#allocation3], 0
    %s7 = scalar_lea.sflag [#allocation3], 1
    %8 = vsyncpa %s7, 0
    %9 = vsyncpa [#allocation4], 0
    %s10 = scalar_lea.sflag [#allocation4], 1
    %11 = vsyncpa %s10, 0
    loop: start=0, step=1, limit=4
    $region2: #{tpu_custom_call.1} parent=1 // loop_pre_header
      _
    $region3: #{tpu_custom_call.1} parent=1 // loop_header
      %s13 = sphi 0, %s17
      %p14 = scmp.ge.s32.totalorder %s13, 4
      %s23 = sphi 0, %s25
      %s26 = sphi 0, %s23
      %s27 = sphi 0, %s26
      %s43 = sphi 0, %s27
      %s49 = sphi 0, %s51
      %s52 = sphi 0, %s49
      %s53 = sphi 0, %s52
      %s69 = sphi 0, %s53
    $region4: #{tpu_custom_call.1} parent=1 // loop_header_branch
      %16 = sbr.rel (%p14) target = $region8
    $region5: #{tpu_custom_call.1} parent=1 // loop_body
      %s18 = ssub.s32 %s13, 1
      %s19 = ssub.s32 %s13, 2
      %s20 = sadd.s32 %s13, 1
      %s21 = ssub.s32 %s13, %s20
      %p22 = scmp.eq.s32.totalorder %s21, 0
      %s24 = sadd.s32 %s23, 1
      %s25 = scalar_select %p22, %s23, %s24
      %p28 = pneg %p22
      %p29 = scmp.eq.s32.totalorder %s13, 1
      %p30 = por %p28, %p29
      %p31 = scmp.ne.s32.totalorder %s23, %s26
      %p32 = scmp.eq.s32.totalorder %s13, 0
      %p33 = por %p31, %p32
      %p34 = scmp.ne.s32.totalorder %s23, %s26
      %p35 = scmp.eq.s32.totalorder %s18, 1
      %p36 = por %p34, %p35
      %p37 = scmp.ne.s32.totalorder %s26, %s27
      %p38 = scmp.eq.s32.totalorder %s18, 0
      %p39 = por %p37, %p38
      %p40 = scmp.ne.s32.totalorder %s26, %s27
      %p41 = scmp.eq.s32.totalorder %s19, 1
      %p42 = por %p40, %p41
      %p44 = scmp.ne.s32.totalorder %s27, %s43
      %p45 = scmp.eq.s32.totalorder %s19, 0
      %p46 = por %p44, %p45
      %s47 = ssub.s32 %s13, %s20
      %p48 = scmp.eq.s32.totalorder %s47, 0
      %s50 = sadd.s32 %s49, 1
      %s51 = scalar_select %p48, %s49, %s50
      %p54 = pneg %p48
      %p55 = scmp.eq.s32.totalorder %s13, 1
      %p56 = por %p54, %p55
      %p57 = scmp.ne.s32.totalorder %s49, %s52
      %p58 = scmp.eq.s32.totalorder %s13, 0
      %p59 = por %p57, %p58
      %p60 = scmp.ne.s32.totalorder %s49, %s52
      %p61 = scmp.eq.s32.totalorder %s18, 1
      %p62 = por %p60, %p61
      %p63 = scmp.ne.s32.totalorder %s52, %s53
      %p64 = scmp.eq.s32.totalorder %s18, 0
      %p65 = por %p63, %p64
      %p66 = scmp.ne.s32.totalorder %s52, %s53
      %p67 = scmp.eq.s32.totalorder %s19, 1
      %p68 = por %p66, %p67
      %p70 = scmp.ne.s32.totalorder %s53, %s69
      %p71 = scmp.eq.s32.totalorder %s19, 0
      %p72 = por %p70, %p71
      %p73 = scmp.le.s32.totalorder 1, %s13
      %p74 = scmp.lt.s32.totalorder %s13, 3
      %p75 = pnand %p73, %p74
      %p76 = pneg %p75
      // Predicated region
      $region9: #{tpu_custom_call.1} parent=5 // pred_check
        _
      $region10: #{tpu_custom_call.1} parent=5 // pred_check_branch
        %78 = sbr.rel (%p75) target = $region12
      $region11: #{tpu_custom_call.1} parent=5 // pred_region
        %s79 = ssub.s32 %s13, 1
      $region12: #{tpu_custom_call.1} parent=5 // pred_fallthru
        _
      %p80 = scmp.lt.s32.totalorder %s13, 2
      // Predicated region
      $region13: #{tpu_custom_call.1} parent=5 // pred_check
        %p81 = pneg %p80
      $region14: #{tpu_custom_call.1} parent=5 // pred_check_branch
        %83 = sbr.rel (%p81) target = $region16
      $region15: #{tpu_custom_call.1} parent=5 // pred_region
        // Predicated region
        $region17: #{tpu_custom_call.1} parent=15 // pred_check
          %p84 = pneg %p33
        $region18: #{tpu_custom_call.1} parent=15 // pred_check_branch
          %86 = sbr.rel (%p84) target = $region20
        $region19: #{tpu_custom_call.1} parent=15 // pred_region
          %s87 = sand.u32 %s23, 1
          %s88 = scalar_lea.sflag [#allocation3], %s87
          %s89 = sand.u32 %s23, 1
          %s90 = smul.addr %s89, 8
          %s91 = scalar_lea.vmem [#allocation2], %s90
          %93 = vsyncadd %s88, 0
          %s94 = smul.addr %s13, 8
          %s95 = scalar_lea.hbm %s0, %s94
          %s97 = sshll.u32 %s95, 4
          %s98 = int_to_ptr.hbm [resolvable:$true] %s97
          %s99 = sshll.u32 %s91, 4
          %s100 = int_to_ptr.vmem [resolvable:$true] %s99
          %102 = dma.hbm_to_vmem [thread:$0]  %s98, 128, %s100, %s88
        $region20: #{tpu_custom_call.1} parent=15 // pred_fallthru
          _
      $region16: #{tpu_custom_call.1} parent=5 // pred_fallthru
        _
      %p103 = scmp.le.s32.totalorder 1, %s13
      %p104 = scmp.lt.s32.totalorder %s13, 3
      %p105 = pnand %p103, %p104
      %p106 = pneg %p105
      // Predicated region
      $region21: #{tpu_custom_call.1} parent=5 // pred_check
        _
      $region22: #{tpu_custom_call.1} parent=5 // pred_check_branch
        %108 = sbr.rel (%p105) target = $region24
      $region23: #{tpu_custom_call.1} parent=5 // pred_region
        %s109 = ssub.s32 %s13, 1
        %s110 = sand.u32 %s26, 1
        %s111 = scalar_lea.sflag [#allocation3], %s110
        %s112 = sand.u32 %s26, 1
        %s113 = smul.addr %s112, 8
        %s114 = scalar_lea.vmem [#allocation2], %s113
        // Predicated region
        $region25: #{tpu_custom_call.1} parent=23 // pred_check
          %p115 = pneg %p39
        $region26: #{tpu_custom_call.1} parent=23 // pred_check_branch
          %117 = sbr.rel (%p115) target = $region28
        $region27: #{tpu_custom_call.1} parent=23 // pred_region
          %119 = dma.done %s111, 128
        $region28: #{tpu_custom_call.1} parent=23 // pred_fallthru
          _
        %s120 = sand.u32 %s26, 1
        %s121 = scalar_lea.sflag [#allocation3], %s120
        %s122 = sand.u32 %s26, 1
        %s123 = smul.addr %s122, 8
        %s124 = scalar_lea.vmem [#allocation2], %s123
        %p125 = pneg %p39
        %p126 = pneg %p36
        %p127 = pneg %p65
        %p128 = pneg %p62
        %s129 = sand.u32 %s52, 1
        %s130 = scalar_lea.sflag [#allocation4], %s129
        %s131 = sand.u32 %s52, 1
        %s132 = smul.addr %s131, 8
        %s133 = scalar_lea.vmem [#allocation5], %s132
        %v134 = vld [vmem:[%s114] sm:$0xff]
        %135 = vadd.xlane.f32.xlu0 %v134
        %v136 = vpop.xlane.xlu0 %135
        %v137 = vrcp.pop 128.0
        %v138 = vmul.f32 128.0, %v137
        %v139 = vsub.f32 1.0, %v138
        %v140 = vmul.f32 %v137, %v139
        %v141 = vadd.f32 %v137, %v140
        %vm142 = vweird.f32 %v137
        %v143 = vsel %vm142, %v137, %v141
        %v144 = vmul.f32 %v136, %v143
        %v145 = vsub.f32 %v134, %v144
        %v146 = vmul.f32 %v145, %v145
        %147 = vadd.xlane.f32.xlu0 %v146
        %v148 = vpop.xlane.xlu0 %147
        %v149 = vmul.f32 %v148, 0.007874016
        %v150 = vrsqrt.pop %v149
        %v151 = vmul.f32 %v150, %v149
        %v152 = vmul.f32 %v151, %v150
        %v153 = vmul.f32 0.5, %v152
        %v154 = vsub.f32 1.5, %v153
        %v155 = vmul.f32 %v150, %v154
        %v156 = vmul.f32 %v149, %v155
        %vm157 = vcmp.eq.f32.partialorder %v149, inf
        %v158 = vsel %vm157, %v149, %v156
        %vm159 = vcmp.eq.f32.partialorder %v149, 0.0
        %v160 = vand.u32 %v149, 2147483648
        %v161 = vsel %vm159, %v160, %v158
        %v162 = vadd.f32 %v161, 1e-08
        %v163 = vrcp.pop %v162
        %v164 = vmul.f32 %v162, %v163
        %v165 = vsub.f32 1.0, %v164
        %v166 = vmul.f32 %v163, %v165
        %v167 = vadd.f32 %v163, %v166
        %vm168 = vweird.f32 %v162
        %vm169 = vweird.f32 %v163
        %vm170 = vmor %vm168, %vm169
        %v171 = vsel %vm170, %v163, %v167
        %v172 = vand.u32 2147483647, %v162
        %vm173 = vcmp.eq.f32.partialorder %v172, 8.507059e+37
        %v174 = vand.u32 %v162, 2147483648
        %v175 = vor.u32 1.1754944e-38, %v174
        %v176 = vsel %vm173, %v175, %v171
        %v177 = vmul.f32 1.0, %v176
        %v178 = vmul.f32 %v145, %v177
        %179 = vmatpush.xpose.msra.mxu0 0.0
        %180 = vmatpush.xpose.msra.mxu0 0.0
        %181 = vmatpush.xpose.msra.mxu0 0.0
        %182 = vmatpush.xpose.msra.mxu0 0.0
        %183 = vmatpush.xpose.msra.mxu0 0.0
        %184 = vmatpush.xpose.msra.mxu0 0.0
        %185 = vmatpush.xpose.msra.mxu0 0.0
        %186 = vmatpush.xpose.msra.mxu0 0.0
        %187 = vmatpush.xpose.msra.mxu0 0.0
        %188 = vmatpush.xpose.msra.mxu0 0.0
        %189 = vmatpush.xpose.msra.mxu0 0.0
        %190 = vmatpush.xpose.msra.mxu0 0.0
        %191 = vmatpush.xpose.msra.mxu0 0.0
        %192 = vmatpush.xpose.msra.mxu0 0.0
        %193 = vmatpush.xpose.msra.mxu0 0.0
        %194 = vmatpush.xpose.msra.mxu0 %v178
        %195 = vmatmul.f32.gmra.mxu0 %v178
        %v196 = vpop.f32.mrf.mxu0
        %v197 = vadd.f32 0.0, %v196
        %198 = vdwg.mxu0
        %v199 = vmul.f32 %v197, 0.125
        %vm200 = vcmp.gt.f32.partialorder %v199, 0.5
        %v201 = vsel %vm200, 1, 0
        %v202 = vcvt.s32.f32 %v201
        %v203 = vlaneseq
        %v204 = vshrl.u32 %v203, 7
        %v205 = vlaneseq
        %v206 = vand.u32 %v205, 127
        %vm207 = vcmp.eq.s32.totalorder %v204, %v206
        %v208 = vsel %vm207, 1, 0
        %v209 = vcvt.s32.f32 %v208
        %v210 = vadd.f32 %v202, %v209
        %vm211 = vcmask 64512
        %v212 = vsel %vm211, %v210, 0.0
        %213 = vadd.xlane.f32.xlu0 %v212
        %v214 = vpop.xlane.xlu0 %213
        %v215 = vrot.slane %v212, 4
        %v216 = vadd.f32 %v212, %v215
        %v217 = vrot.slane %v216, 2
        %v218 = vadd.f32 %v216, %v217
        %v219 = vrot.slane %v218, 1
        %v220 = vadd.f32 %v218, %v219
        %v221 = vadd.f32 %v214, 1e-08
        %v222 = vrsqrt.pop %v221
        %v223 = vmul.f32 %v222, %v221
        %v224 = vmul.f32 %v223, %v222
        %v225 = vmul.f32 0.5, %v224
        %v226 = vsub.f32 1.5, %v225
        %v227 = vmul.f32 %v222, %v226
        %vm228 = vweird.f32 %v221
        %vm229 = vweird.f32 %v222
        %vm230 = vmor %vm228, %vm229
        %v231 = vsel %vm230, %v222, %v227
        %v232 = vmul.f32 %v210, %v231
        %v233 = vadd.f32 %v220, 1e-08
        %v234 = vrsqrt.pop %v233
        %v235 = vmul.f32 %v234, %v233
        %v236 = vmul.f32 %v235, %v234
        %v237 = vmul.f32 0.5, %v236
        %v238 = vsub.f32 1.5, %v237
        %v239 = vmul.f32 %v234, %v238
        %vm240 = vweird.f32 %v233
        %vm241 = vweird.f32 %v234
        %vm242 = vmor %vm240, %vm241
        %v243 = vsel %vm242, %v234, %v239
        %v244 = vmul.f32 %v232, %v243
        %v245 = vsel %vm211, %v244, 0.0
        %246 = vst [vmem:[%s133] sm:$0xff] %v245
        %s247 = sand.u32 %s52, 1
        %s248 = scalar_lea.sflag [#allocation4], %s247
        %s249 = sand.u32 %s52, 1
        %s250 = smul.addr %s249, 8
        %s251 = scalar_lea.vmem [#allocation5], %s250
        // Predicated region
        $region29: #{tpu_custom_call.1} parent=23 // pred_check
          %p252 = pneg %p62
        $region30: #{tpu_custom_call.1} parent=23 // pred_check_branch
          %254 = sbr.rel (%p252) target = $region32
        $region31: #{tpu_custom_call.1} parent=23 // pred_region
          %256 = vsyncadd %s248, 0
          %s257 = smul.addr %s18, 8
          %s258 = scalar_lea.hbm %s1, %s257
          %s260 = sshll.u32 %s251, 4
          %s261 = int_to_ptr.vmem [resolvable:$true] %s260
          %s262 = sshll.u32 %s258, 4
          %s263 = int_to_ptr.hbm [resolvable:$true] %s262
          %265 = dma.vmem_to_hbm [thread:$0]  %s261, 128, %s263, %s248
        $region32: #{tpu_custom_call.1} parent=23 // pred_fallthru
          _
      $region24: #{tpu_custom_call.1} parent=5 // pred_fallthru
        _
      %p266 = scmp.le.s32.totalorder 2, %s13
      // Predicated region
      $region33: #{tpu_custom_call.1} parent=5 // pred_check
        %p267 = pneg %p266
      $region34: #{tpu_custom_call.1} parent=5 // pred_check_branch
        %269 = sbr.rel (%p267) target = $region36
      $region35: #{tpu_custom_call.1} parent=5 // pred_region
        %s270 = ssub.s32 %s13, 2
        // Predicated region
        $region37: #{tpu_custom_call.1} parent=35 // pred_check
          %p271 = pneg %p68
        $region38: #{tpu_custom_call.1} parent=35 // pred_check_branch
          %273 = sbr.rel (%p271) target = $region40
        $region39: #{tpu_custom_call.1} parent=35 // pred_region
          %s274 = sand.u32 %s53, 1
          %s275 = scalar_lea.sflag [#allocation4], %s274
          %s276 = sand.u32 %s53, 1
          %s277 = smul.addr %s276, 8
          %s278 = scalar_lea.vmem [#allocation5], %s277
          %280 = dma.done %s275, 128
        $region40: #{tpu_custom_call.1} parent=35 // pred_fallthru
          _
      $region36: #{tpu_custom_call.1} parent=5 // pred_fallthru
        _
    $region6: #{tpu_custom_call.1} parent=1 // loop_footer
      %s17 = sadd.s32 1, %s13
    $region7: #{tpu_custom_call.1} parent=1 // loop_footer_branch
      %12 = sbr.rel target = $region3
    $region8: #{tpu_custom_call.1} parent=1 // loop_exit
      _
    %281 = vsyncpa [#allocation3], 1
    %s282 = scalar_lea.sflag [#allocation3], 1
    %283 = vsyncpa %s282, 1
    %284 = vsyncpa [#allocation4], 1
    %s285 = scalar_lea.sflag [#allocation4], 1
    %286 = vsyncpa %s285, 1

</llo_original>
